<compile_context>
chip_gen: v7x
topology: tpu7x:2x2x1
jax: 0.10.0
libtpu: 0.0.40
codegen_flags: <defaults>
</compile_context>

<pallas_src>
import jax
import jax.numpy as jnp
from jax.experimental import pallas as pl
from jax.experimental.pallas import tpu as pltpu


def _round_up(a, b):
    return (a + b - 1) // b * b


def _patch_merge_kernel(x_ref, w_ref, b_ref, o_ref):
    # x_ref: (TM, K)      patch rows (f32 or bf16)
    # w_ref: (K, Coutp)   BN-folded conv weight (same dtype as x)
    # b_ref: (1, Coutp)   BN-folded bias (f32)
    # o_ref: (TM, Coutp)  f32 output tile (lane-dense: Coutp % 128 == 0)
    acc = jnp.dot(x_ref[...], w_ref[...], preferred_element_type=jnp.float32)  # MXU
    o_ref[...] = (acc + b_ref[...]).astype(o_ref.dtype)


def patch_merging_forward(x_nchw, gamma, beta, conv_w, eps=1e-5, tm=512,
                          compute_dtype=jnp.float32):
    """x_nchw: (N, C, H, W) f32.  conv_w: (Cout, C, 2, 2) f32.
    Returns (N, Cout, H//2, W//2) f32, matching BatchNorm2d(train) + Conv2d(2,2,0,bias=False)."""
    N, C, H, W = x_nchw.shape
    Cout = conv_w.shape[0]
    Ho, Wo = H // 2, W // 2

    # ---- BatchNorm2d batch statistics: single fused pass over x (sum, sum of squares) ----
    # NOTE: E[x^2]-mean^2 can cancel for large-mean inputs; clamp at 0 (inputs here are
    # activations, typically zero-centered).
    n_elems = N * H * W
    s1 = jnp.sum(x_nchw, axis=(0, 2, 3))
    s2 = jnp.sum(x_nchw * x_nchw, axis=(0, 2, 3))
    mean = s1 / n_elems
    var = jnp.maximum(s2 / n_elems - mean * mean, 0.0)
    scale_c = gamma / jnp.sqrt(var + eps)          # (C,)
    shift_c = beta - mean * scale_c                # (C,)

    # ---- space-to-depth: (N, C, H, W) -> (M, 4*C), patch slot index = c*4 + ky*2 + kx ----
    # TODO(synk): this layout change (and the final NCHW transpose) stays in XLA glue; a
    # channels-last consumer could take the (M, Cout) / (N, Ho, Wo, Cout) result directly.
    K = 4 * C
    M = N * Ho * Wo
    xp = x_nchw.reshape(N, C, Ho, 2, Wo, 2)
    xp = xp.transpose(0, 2, 4, 1, 3, 5).reshape(M, K)

    # ---- fold BN into the conv weight / bias (kernel sees only matmul + bias add) ----
    scale_k = jnp.repeat(scale_c, 4)               # (K,) each channel occupies 4 adjacent slots
    shift_k = jnp.repeat(shift_c, 4)               # (K,)
    w_r = conv_w.reshape(Cout, K).T                # (K, Cout), matching (c, ky, kx) flattening
    w_fold = scale_k[:, None] * w_r                # (K, Cout)
    bias = shift_k @ w_r                           # (Cout,)

    # ---- lane-dense output: pad Cout to a multiple of 128 (sliced off below) ----
    Coutp = _round_up(Cout, 128)
    if Coutp != Cout:
        w_fold = jnp.pad(w_fold, ((0, 0), (0, Coutp - Cout)))
        bias = jnp.pad(bias, ((0, Coutp - Cout),))
    bias2d = bias.reshape(1, Coutp).astype(jnp.float32)

    # ---- M tiling: tm multiple of 16 (bf16-tile legal), padded rows, >=2 blocks if possible ----
    ALIGN = 16
    M_pad = _round_up(M, ALIGN)
    if M_pad != M:
        xp = jnp.pad(xp, ((0, M_pad - M), (0, 0)))
    tm = min(_round_up(max(tm, ALIGN), ALIGN), M_pad)
    if pl.cdiv(M_pad, tm) < 2 and M_pad >= 2 * ALIGN:
        tm = _round_up(pl.cdiv(M_pad, 2), ALIGN)   # give both v7x TensorCores a block
    grid = (pl.cdiv(M_pad, tm),)

    # ---- operand dtype (bf16 on v6e/v7x halves x-stream HBM traffic; accumulate stays f32) ----
    x_in = xp.astype(compute_dtype)
    w_in = w_fold.astype(compute_dtype)

    # ---- explicit VMEM budget for the double-buffered tiles (+ headroom) ----
    in_bytes = jnp.dtype(compute_dtype).itemsize
    vmem_needed = (2 * tm * K * in_bytes            # x tiles (double-buffered)
                   + 2 * K * Coutp * in_bytes       # weight (conservatively x2)
                   + 2 * Coutp * 4                  # bias
                   + 2 * tm * Coutp * 4)            # output tiles (double-buffered)
    vmem_limit = int(min(2 * vmem_needed + (2 << 20), 96 << 20))

    out2d = pl.pallas_call(
        _patch_merge_kernel,
        out_shape=jax.ShapeDtypeStruct((M_pad, Coutp), jnp.float32),
        grid_spec=pltpu.PrefetchScalarGridSpec(
            num_scalar_prefetch=0,
            grid=grid,
            in_specs=[
                pl.BlockSpec((tm, K), lambda i: (i, 0)),
                pl.BlockSpec((K, Coutp), lambda i: (0, 0)),
                pl.BlockSpec((1, Coutp), lambda i: (0, 0)),
            ],
            out_specs=pl.BlockSpec((tm, Coutp), lambda i: (i, 0)),
        ),
        compiler_params=pltpu.CompilerParams(
            dimension_semantics=("parallel",),
            vmem_limit_bytes=vmem_limit),
    )(x_in, w_in, bias2d)

    # strip padding, (M, Cout) -> (N, Ho, Wo, Cout) -> NCHW
    out2d = out2d[:M, :Cout]
    return out2d.reshape(N, Ho, Wo, Cout).transpose(0, 3, 1, 2)


def _reference(x_nchw, gamma, beta, conv_w, eps=1e-5):
    """Pure-JAX reference matching PyTorch BatchNorm2d(train) + Conv2d(2,2,0,bias=False)."""
    mean = jnp.mean(x_nchw, axis=(0, 2, 3))
    var = jnp.mean((x_nchw - mean[None, :, None, None]) ** 2, axis=(0, 2, 3))
    xn = (x_nchw - mean[None, :, None, None]) / jnp.sqrt(var[None, :, None, None] + eps)
    xn = xn * gamma[None, :, None, None] + beta[None, :, None, None]
    return jax.lax.conv_general_dilated(
        xn, conv_w, window_strides=(2, 2), padding="VALID",
        dimension_numbers=("NCHW", "OIHW", "NCHW"))


if __name__ == "__main__":
    # Small shapes consistent with the module: dim=4, out_dim=8, input (2, 4, 16, 16)
    N, C, H, W = 2, 4, 16, 16
    Cout = 8

    key = jax.random.PRNGKey(0)
    kx, kw, kg, kb = jax.random.split(key, 4)
    x = jax.random.normal(kx, (N, C, H, W), dtype=jnp.float32)
    conv_w = 0.1 * jax.random.normal(kw, (Cout, C, 2, 2), dtype=jnp.float32)
    gamma = 1.0 + 0.1 * jax.random.normal(kg, (C,), dtype=jnp.float32)
    beta = 0.1 * jax.random.normal(kb, (C,), dtype=jnp.float32)

    ref = _reference(x, gamma, beta, conv_w)

    # f32 path
    out = jax.block_until_ready(patch_merging_forward(x, gamma, beta, conv_w))
    assert out.shape == (N, Cout, H // 2, W // 2), out.shape
    assert jnp.allclose(out, ref, atol=1e-4, rtol=1e-4), float(jnp.max(jnp.abs(out - ref)))

    # bf16-operand path (v6e/v7x): f32 accumulate, widened tolerance for bf16 rounding.
    out_bf16 = jax.block_until_ready(
        patch_merging_forward(x, gamma, beta, conv_w, compute_dtype=jnp.bfloat16))
    assert out_bf16.shape == (N, Cout, H // 2, W // 2), out_bf16.shape
    assert jnp.allclose(out_bf16, ref, atol=5e-2, rtol=5e-2), float(jnp.max(jnp.abs(out_bf16 - ref)))

    print("KERNEL_OK")
</pallas_src>

<mosaic_0001>
module attributes {stable_mosaic.version = 11 : i64} {
  func.func @_patch_merge_kernel(%arg0: i32, %arg1: memref<64x16xf32, #tpu.memory_space<vmem>>, %arg2: memref<16x128xf32, #tpu.memory_space<vmem>>, %arg3: memref<1x128xf32, #tpu.memory_space<vmem>>, %arg4: memref<64x128xf32, #tpu.memory_space<vmem>>) attributes {dimension_semantics = [#tpu.dimension_semantics<parallel>], iteration_bounds = array<i64: 2>, scalar_prefetch = 0 : i64, scratch_operands = 0 : i64, tpu.core_type = #tpu.core_type<tc>, window_params = [{transform_indices = @transform_0, window_bounds = array<i64: 64, 16>}, {pipeline_mode = #tpu.pipeline_mode<synchronous>, transform_indices = @transform_1, window_bounds = array<i64: 16, 128>}, {pipeline_mode = #tpu.pipeline_mode<synchronous>, transform_indices = @transform_2, window_bounds = array<i64: 1, 128>}, {transform_indices = @transform_3, window_bounds = array<i64: 64, 128>}]} {
    %c0 = arith.constant 0 : index
    %c0_0 = arith.constant 0 : index
    %0 = vector.load %arg1[%c0, %c0_0] : memref<64x16xf32, #tpu.memory_space<vmem>>, vector<64x16xf32>
    %c0_1 = arith.constant 0 : index
    %c0_2 = arith.constant 0 : index
    %1 = vector.load %arg2[%c0_1, %c0_2] : memref<16x128xf32, #tpu.memory_space<vmem>>, vector<16x128xf32>
    %cst = arith.constant dense<0.000000e+00> : vector<64x128xf32>
    %2 = tpu.matmul %0, %1, %cst {dimension_numbers = #tpu.dot_dimension_numbers<[1], [0], [0], [1], [0, 0, 1, 1], [], []>} : vector<64x16xf32>, vector<16x128xf32>, vector<64x128xf32> -> vector<64x128xf32>
    %c0_3 = arith.constant 0 : index
    %c0_4 = arith.constant 0 : index
    %3 = vector.load %arg3[%c0_3, %c0_4] : memref<1x128xf32, #tpu.memory_space<vmem>>, vector<1x128xf32>
    %4 = vector.broadcast %3 : vector<1x128xf32> to vector<64x128xf32>
    %5 = arith.addf %2, %4 : vector<64x128xf32>
    %c0_5 = arith.constant 0 : index
    %c0_6 = arith.constant 0 : index
    %6 = vector.load %arg4[%c0_5, %c0_6] : memref<64x128xf32, #tpu.memory_space<vmem>>, vector<64x128xf32>
    tpu.vector_store %arg4[%c0_5, %c0_6], %5 {strides = array<i32>} : memref<64x128xf32, #tpu.memory_space<vmem>>, vector<64x128xf32>,
    return
  }
  func.func @transform_0(%arg0: i32) -> (i32, i32) {
    %c0_i32 = arith.constant 0 : i32
    %c0_i32_0 = arith.constant 0 : i32
    return %arg0, %c0_i32 : i32, i32
  }
  func.func @transform_1(%arg0: i32) -> (i32, i32) {
    %c0_i32 = arith.constant 0 : i32
    %c0_i32_0 = arith.constant 0 : i32
    %c0_i32_1 = arith.constant 0 : i32
    return %c0_i32, %c0_i32_0 : i32, i32
  }
  func.func @transform_2(%arg0: i32) -> (i32, i32) {
    %c0_i32 = arith.constant 0 : i32
    %c0_i32_0 = arith.constant 0 : i32
    %c0_i32_1 = arith.constant 0 : i32
    return %c0_i32, %c0_i32_0 : i32, i32
  }
  func.func @transform_3(%arg0: i32) -> (i32, i32) {
    %c0_i32 = arith.constant 0 : i32
    %c0_i32_0 = arith.constant 0 : i32
    return %arg0, %c0_i32 : i32, i32
  }
}

</mosaic_0001>

<llo_original>
// kernel: tpu_custom_call.1
$region0: #{tpu_custom_call.1}
  #allocation0 [shape = 'u32[]', space=smem, size = 0x4, offset = 0x4, fixed_abs, tag = 'smem constant byte address 0x4 - core index']
  #allocation1 [shape = 'u32[144,128]{1,0:T(1,128)}', space=vmem, size = 0x12000, scoped, tag = 'internal scratch']
  %s0 = inlined_call_operand.vmem [shape: f32[128,16], index: 0, kind: input, shape index: {}]
  %s1 = inlined_call_operand.vmem [shape: f32[16,128], index: 1, kind: input, shape index: {}]
  %s2 = inlined_call_operand.vmem [shape: f32[1,128], index: 2, kind: input, shape index: {}]
  %s3 = inlined_call_operand.hbm [shape: f32[128,128], index: 3, kind: output, shape index: {}]
  %s4 = sld [smem:[#allocation0]]
  $region45: #{tpu_custom_call.1} parent=0
    _
  %s6 = ssub.s32 1, %s4
  %s7 = scalar_select 0, %s6, %s4
  $region1: #{tpu_custom_call.1} parent=0
    #allocation2 [shape = 'u8[65536]{0}', space=vmem, size = 0x10000, scoped, tag = 'output window, operand 0']
    #allocation3 [shape = 's32[2]{0}', space=sflag, size = 0x8, scoped, tag = 'scoped memory for tpu_custom_call.1']
    %8 = vsyncpa [#allocation3], 0
    %s9 = scalar_lea.sflag [#allocation3], 1
    %10 = vsyncpa %s9, 0
    loop: start=0, step=1, limit=4
    $region2: #{tpu_custom_call.1} parent=1 // loop_pre_header
      _
    $region3: #{tpu_custom_call.1} parent=1 // loop_header
      %s12 = sphi 0, %s16
      %p13 = scmp.ge.s32.totalorder %s12, 4
      %s22 = sphi 0, %s24
      %s25 = sphi 0, %s22
      %s26 = sphi 0, %s25
      %s42 = sphi 0, %s26
      %s46 = sphi 0, %s46
      %s48 = sphi 0, %s46
      %s49 = sphi 0, %s48
      %s63 = sphi 0, %s49
      %s67 = sphi 0, %s67
      %s69 = sphi 0, %s67
      %s70 = sphi 0, %s69
      %s84 = sphi 0, %s70
      %s90 = sphi 0, %s92
      %s93 = sphi 0, %s90
      %s94 = sphi 0, %s93
      %s110 = sphi 0, %s94
    $region4: #{tpu_custom_call.1} parent=1 // loop_header_branch
      %15 = sbr.rel (%p13) target = $region8
    $region5: #{tpu_custom_call.1} parent=1 // loop_body
      %s17 = ssub.s32 %s12, 1
      %s18 = ssub.s32 %s12, 2
      %s19 = sadd.s32 %s12, 1
      %s20 = ssub.s32 %s12, %s19
      %p21 = scmp.eq.s32.totalorder %s20, 0
      %s23 = sadd.s32 %s22, 1
      %s24 = scalar_select %p21, %s22, %s23
      %p27 = pneg %p21
      %p28 = scmp.eq.s32.totalorder %s12, 1
      %p29 = por %p27, %p28
      %p30 = scmp.ne.s32.totalorder %s22, %s25
      %p31 = scmp.eq.s32.totalorder %s12, 0
      %p32 = por %p30, %p31
      %p33 = scmp.ne.s32.totalorder %s22, %s25
      %p34 = scmp.eq.s32.totalorder %s17, 1
      %p35 = por %p33, %p34
      %p36 = scmp.ne.s32.totalorder %s25, %s26
      %p37 = scmp.eq.s32.totalorder %s17, 0
      %p38 = por %p36, %p37
      %p39 = scmp.ne.s32.totalorder %s25, %s26
      %p40 = scmp.eq.s32.totalorder %s18, 1
      %p41 = por %p39, %p40
      %p43 = scmp.ne.s32.totalorder %s26, %s42
      %p44 = scmp.eq.s32.totalorder %s18, 0
      %p45 = por %p43, %p44
      %s47 = sadd.s32 %s46, 1
      %p50 = scmp.eq.s32.totalorder %s12, 1
      %p51 = scmp.ne.s32.totalorder %s46, %s48
      %p52 = scmp.eq.s32.totalorder %s12, 0
      %p53 = por %p51, %p52
      %p54 = scmp.ne.s32.totalorder %s46, %s48
      %p55 = scmp.eq.s32.totalorder %s17, 1
      %p56 = por %p54, %p55
      %p57 = scmp.ne.s32.totalorder %s48, %s49
      %p58 = scmp.eq.s32.totalorder %s17, 0
      %p59 = por %p57, %p58
      %p60 = scmp.ne.s32.totalorder %s48, %s49
      %p61 = scmp.eq.s32.totalorder %s18, 1
      %p62 = por %p60, %p61
      %p64 = scmp.ne.s32.totalorder %s49, %s63
      %p65 = scmp.eq.s32.totalorder %s18, 0
      %p66 = por %p64, %p65
      %s68 = sadd.s32 %s67, 1
      %p71 = scmp.eq.s32.totalorder %s12, 1
      %p72 = scmp.ne.s32.totalorder %s67, %s69
      %p73 = scmp.eq.s32.totalorder %s12, 0
      %p74 = por %p72, %p73
      %p75 = scmp.ne.s32.totalorder %s67, %s69
      %p76 = scmp.eq.s32.totalorder %s17, 1
      %p77 = por %p75, %p76
      %p78 = scmp.ne.s32.totalorder %s69, %s70
      %p79 = scmp.eq.s32.totalorder %s17, 0
      %p80 = por %p78, %p79
      %p81 = scmp.ne.s32.totalorder %s69, %s70
      %p82 = scmp.eq.s32.totalorder %s18, 1
      %p83 = por %p81, %p82
      %p85 = scmp.ne.s32.totalorder %s70, %s84
      %p86 = scmp.eq.s32.totalorder %s18, 0
      %p87 = por %p85, %p86
      %s88 = ssub.s32 %s12, %s19
      %p89 = scmp.eq.s32.totalorder %s88, 0
      %s91 = sadd.s32 %s90, 1
      %s92 = scalar_select %p89, %s90, %s91
      %p95 = pneg %p89
      %p96 = scmp.eq.s32.totalorder %s12, 1
      %p97 = por %p95, %p96
      %p98 = scmp.ne.s32.totalorder %s90, %s93
      %p99 = scmp.eq.s32.totalorder %s12, 0
      %p100 = por %p98, %p99
      %p101 = scmp.ne.s32.totalorder %s90, %s93
      %p102 = scmp.eq.s32.totalorder %s17, 1
      %p103 = por %p101, %p102
      %p104 = scmp.ne.s32.totalorder %s93, %s94
      %p105 = scmp.eq.s32.totalorder %s17, 0
      %p106 = por %p104, %p105
      %p107 = scmp.ne.s32.totalorder %s93, %s94
      %p108 = scmp.eq.s32.totalorder %s18, 1
      %p109 = por %p107, %p108
      %p111 = scmp.ne.s32.totalorder %s94, %s110
      %p112 = scmp.eq.s32.totalorder %s18, 0
      %p113 = por %p111, %p112
      %p114 = scmp.le.s32.totalorder 1, %s12
      %p115 = scmp.lt.s32.totalorder %s12, 3
      %p116 = pnand %p114, %p115
      %p117 = pneg %p116
      // Predicated region
      $region9: #{tpu_custom_call.1} parent=5 // pred_check
        _
      $region10: #{tpu_custom_call.1} parent=5 // pred_check_branch
        %119 = sbr.rel (%p116) target = $region12
      $region11: #{tpu_custom_call.1} parent=5 // pred_region
        %s120 = ssub.s32 %s12, 1
        // Predicated region
        $region13: #{tpu_custom_call.1} parent=11 // pred_check
          %p121 = pneg %p59
        $region14: #{tpu_custom_call.1} parent=11 // pred_check_branch
          %123 = sbr.rel (%p121) target = $region16
        $region15: #{tpu_custom_call.1} parent=11 // pred_region
          _
        $region16: #{tpu_custom_call.1} parent=11 // pred_fallthru
          _
        // Predicated region
        $region17: #{tpu_custom_call.1} parent=11 // pred_check
          %p124 = pneg %p80
        $region18: #{tpu_custom_call.1} parent=11 // pred_check_branch
          %126 = sbr.rel (%p124) target = $region20
        $region19: #{tpu_custom_call.1} parent=11 // pred_region
          _
        $region20: #{tpu_custom_call.1} parent=11 // pred_fallthru
          _
      $region12: #{tpu_custom_call.1} parent=5 // pred_fallthru
        _
      %p127 = scmp.lt.s32.totalorder %s12, 2
      // Predicated region
      $region21: #{tpu_custom_call.1} parent=5 // pred_check
        %p128 = pneg %p127
      $region22: #{tpu_custom_call.1} parent=5 // pred_check_branch
        %130 = sbr.rel (%p128) target = $region24
      $region23: #{tpu_custom_call.1} parent=5 // pred_region
        // Predicated region
        $region25: #{tpu_custom_call.1} parent=23 // pred_check
          %p131 = pneg %p32
        $region26: #{tpu_custom_call.1} parent=23 // pred_check_branch
          %133 = sbr.rel (%p131) target = $region28
        $region27: #{tpu_custom_call.1} parent=23 // pred_region
          %s134 = smul.u32 8, %s12
          %p135 = scmp.lt.s32.totalorder %s134, 15
          %s136 = scalar_select %p135, %s134, 15
          %s137 = smul.addr %s136, 8
          %s138 = scalar_lea.vmem %s0, %s137
          %s139 = smul.u32 8, %s12
        $region28: #{tpu_custom_call.1} parent=23 // pred_fallthru
          _
      $region24: #{tpu_custom_call.1} parent=5 // pred_fallthru
        _
      %p140 = scmp.le.s32.totalorder 1, %s12
      %p141 = scmp.lt.s32.totalorder %s12, 3
      %p142 = pnand %p140, %p141
      %p143 = pneg %p142
      // Predicated region
      $region29: #{tpu_custom_call.1} parent=5 // pred_check
        _
      $region30: #{tpu_custom_call.1} parent=5 // pred_check_branch
        %145 = sbr.rel (%p142) target = $region32
      $region31: #{tpu_custom_call.1} parent=5 // pred_region
        %s146 = ssub.s32 %s12, 1
        %s147 = smul.u32 8, %s17
        %p148 = scmp.lt.s32.totalorder %s147, 15
        %s149 = scalar_select %p148, %s147, 15
        %s150 = smul.addr %s149, 8
        %s151 = scalar_lea.vmem %s0, %s150
        %p152 = pneg %p38
        %p153 = pneg %p35
        %p154 = pneg %p59
        %p155 = pneg %p56
        %p156 = pneg %p80
        %p157 = pneg %p77
        %p158 = pneg %p106
        %p159 = pneg %p103
        %s160 = sand.u32 %s93, 1
        %s161 = scalar_lea.sflag [#allocation3], %s160
        %s162 = sand.u32 %s93, 1
        %s163 = smul.addr %s162, 64
        %s164 = scalar_lea.vmem [#allocation2], %s163
        %s165 = smul.u32 8, %s17
        %p166 = scmp.lt.s32.totalorder %s165, 15
        %s167 = scalar_select %p166, %s165, 15
        %s168 = smul.addr %s167, 8
        %s169 = scalar_lea.vmem %s0, %s168
        %s170 = smul.u32 8, %s17
        %s171 = smul.u32 8, %s17
        %v172 = vld [vmem:[%s169] sm:$0xff]
        %v173 = vld [vmem:[%s169 + $0x8] sm:$0xff]
        %v174 = vld [vmem:[%s169 + $0x10] sm:$0xff]
        %v175 = vld [vmem:[%s169 + $0x18] sm:$0xff]
        %v176 = vld [vmem:[%s169 + $0x20] sm:$0xff]
        %v177 = vld [vmem:[%s169 + $0x28] sm:$0xff]
        %v178 = vld [vmem:[%s169 + $0x30] sm:$0xff]
        %v179 = vld [vmem:[%s169 + $0x38] sm:$0xff]
        %v180 = vld [vmem:[%s1] sm:$0xff]
        %v181 = vld [vmem:[%s1 + $0x8] sm:$0xff]
        %v182 = vld [vmem:[%s2] sm:$0x1]
        %v184 = vlaneseq
        %v185 = vshrl.u32 %v184, 7
        %v186 = vsub.s32 0, %v185
        %v187 = vrot.slane %v182, %v186
        %vm189 = vcmask 130048
        %v191 = vsel %vm189, %v172, 0
        %v194 = vsel %vm189, %v173, 0
        %v197 = vsel %vm189, %v174, 0
        %v200 = vsel %vm189, %v175, 0
        %v203 = vsel %vm189, %v176, 0
        %v206 = vsel %vm189, %v177, 0
        %v209 = vsel %vm189, %v178, 0
        %v212 = vsel %vm189, %v179, 0
        %214 = vmatprep.subr.mxu0 0.0
        %215 = vmatpush1.msra.mxu0 %v180
        %216 = vmatprep.subr.mxu0 0.0
        %217 = vmatpush1.msra.mxu0 %v181
        %218 = vmatprep.subr.mxu0 0.0
        %219 = vmatpush1.msra.mxu0 0.0
        %220 = vmatprep.subr.mxu0 0.0
        %221 = vmatpush1.msra.mxu0 0.0
        %222 = vmatprep.subr.mxu0 0.0
        %223 = vmatpush1.msra.mxu0 0.0
        %224 = vmatprep.subr.mxu0 0.0
        %225 = vmatpush1.msra.mxu0 0.0
        %226 = vmatprep.subr.mxu0 0.0
        %227 = vmatpush1.msra.mxu0 0.0
        %228 = vmatprep.subr.mxu0 0.0
        %229 = vmatpush1.msra.mxu0 0.0
        %230 = vmatprep.subr.mxu0 0.0
        %231 = vmatpush1.msra.mxu0 0.0
        %232 = vmatprep.subr.mxu0 0.0
        %233 = vmatpush1.msra.mxu0 0.0
        %234 = vmatprep.subr.mxu0 0.0
        %235 = vmatpush1.msra.mxu0 0.0
        %236 = vmatprep.subr.mxu0 0.0
        %237 = vmatpush1.msra.mxu0 0.0
        %238 = vmatprep.subr.mxu0 0.0
        %239 = vmatpush1.msra.mxu0 0.0
        %240 = vmatprep.subr.mxu0 0.0
        %241 = vmatpush1.msra.mxu0 0.0
        %242 = vmatprep.subr.mxu0 0.0
        %243 = vmatpush1.msra.mxu0 0.0
        %244 = vmatprep.subr.mxu0 0.0
        %245 = vmatpush1.msra.mxu0 0.0
        %246 = vmatprep.subr.mxu0 0.0
        %247 = vmatpush1.msra.mxu0 0.0
        %248 = vmatprep.subr.mxu0 0.0
        %249 = vmatpush1.msra.mxu0 0.0
        %250 = vmatprep.subr.mxu0 0.0
        %251 = vmatpush1.msra.mxu0 0.0
        %252 = vmatprep.subr.mxu0 0.0
        %253 = vmatpush1.msra.mxu0 0.0
        %254 = vmatprep.subr.mxu0 0.0
        %255 = vmatpush1.msra.mxu0 0.0
        %256 = vmatprep.subr.mxu0 0.0
        %257 = vmatpush1.msra.mxu0 0.0
        %258 = vmatprep.subr.mxu0 0.0
        %259 = vmatpush1.msra.mxu0 0.0
        %260 = vmatprep.subr.mxu0 0.0
        %261 = vmatpush1.msra.mxu0 0.0
        %262 = vmatprep.subr.mxu0 0.0
        %263 = vmatpush1.msra.mxu0 0.0
        %264 = vmatprep.subr.mxu0 0.0
        %265 = vmatpush1.msra.mxu0 0.0
        %266 = vmatprep.subr.mxu0 0.0
        %267 = vmatpush1.msra.mxu0 0.0
        %268 = vmatprep.subr.mxu0 0.0
        %269 = vmatpush1.msra.mxu0 0.0
        %270 = vmatprep.subr.mxu0 0.0
        %271 = vmatpush1.msra.mxu0 0.0
        %272 = vmatprep.subr.mxu0 0.0
        %273 = vmatpush1.msra.mxu0 0.0
        %274 = vmatprep.subr.mxu0 0.0
        %275 = vmatpush1.msra.mxu0 0.0
        %276 = vmatprep.subr.mxu0 0.0
        %277 = vmatpush1.msra.mxu0 0.0
        %278 = vmatprep.mubr.f32.mxu0 0.0
        %279 = vmatmul.mubr.f32.gmra.mrb[0].mxu0 %v191
        %v280 = vpop.f32.mrb[0].mxu0
        %v281 = vadd.f32 %v187, %v280
        %v282 = vpop.f32.mrb[0].mxu0
        %283 = vmatprep.mubr.f32.mxu0 0.0
        %284 = vmatmul.mubr.f32.gmra.mrb[0].mxu0 %v194
        %v285 = vpop.f32.mrb[0].mxu0
        %v286 = vadd.f32 %v187, %v285
        %v287 = vpop.f32.mrb[0].mxu0
        %288 = vmatprep.mubr.f32.mxu0 0.0
        %289 = vmatmul.mubr.f32.gmra.mrb[0].mxu0 %v197
        %v290 = vpop.f32.mrb[0].mxu0
        %v291 = vadd.f32 %v187, %v290
        %v292 = vpop.f32.mrb[0].mxu0
        %293 = vmatprep.mubr.f32.mxu0 0.0
        %294 = vmatmul.mubr.f32.gmra.mrb[0].mxu0 %v200
        %v295 = vpop.f32.mrb[0].mxu0
        %v296 = vadd.f32 %v187, %v295
        %v297 = vpop.f32.mrb[0].mxu0
        %298 = vmatprep.mubr.f32.mxu0 0.0
        %299 = vmatmul.mubr.f32.gmra.mrb[0].mxu0 %v203
        %v300 = vpop.f32.mrb[0].mxu0
        %v301 = vadd.f32 %v187, %v300
        %v302 = vpop.f32.mrb[0].mxu0
        %303 = vmatprep.mubr.f32.mxu0 0.0
        %304 = vmatmul.mubr.f32.gmra.mrb[0].mxu0 %v206
        %v305 = vpop.f32.mrb[0].mxu0
        %v306 = vadd.f32 %v187, %v305
        %v307 = vpop.f32.mrb[0].mxu0
        %308 = vmatprep.mubr.f32.mxu0 0.0
        %309 = vmatmul.mubr.f32.gmra.mrb[0].mxu0 %v209
        %v310 = vpop.f32.mrb[0].mxu0
        %v311 = vadd.f32 %v187, %v310
        %v312 = vpop.f32.mrb[0].mxu0
        %313 = vmatprep.mubr.f32.mxu0 0.0
        %314 = vmatmul.mubr.f32.gmra.mrb[0].mxu0 %v212
        %v315 = vpop.f32.mrb[0].mxu0
        %v316 = vadd.f32 %v187, %v315
        %v317 = vpop.f32.mrb[0].mxu0
        %318 = vdwg.mxu0
        %319 = vst [vmem:[%s164] sm:$0xff] %v281
        %320 = vst [vmem:[%s164 + $0x8] sm:$0xff] %v286
        %321 = vst [vmem:[%s164 + $0x10] sm:$0xff] %v291
        %322 = vst [vmem:[%s164 + $0x18] sm:$0xff] %v296
        %323 = vst [vmem:[%s164 + $0x20] sm:$0xff] %v301
        %324 = vst [vmem:[%s164 + $0x28] sm:$0xff] %v306
        %325 = vst [vmem:[%s164 + $0x30] sm:$0xff] %v311
        %326 = vst [vmem:[%s164 + $0x38] sm:$0xff] %v316
        %s327 = sand.u32 %s93, 1
        %s328 = scalar_lea.sflag [#allocation3], %s327
        %s329 = sand.u32 %s93, 1
        %s330 = smul.addr %s329, 64
        %s331 = scalar_lea.vmem [#allocation2], %s330
        // Predicated region
        $region33: #{tpu_custom_call.1} parent=31 // pred_check
          %p332 = pneg %p103
        $region34: #{tpu_custom_call.1} parent=31 // pred_check_branch
          %334 = sbr.rel (%p332) target = $region36
        $region35: #{tpu_custom_call.1} parent=31 // pred_region
          %s335 = smul.u32 8, %s17
          %s337 = ssub.s32 1024, 1024
          %338 = vsyncadd %s328, %s337
          %s339 = smul.addr %s335, 128
          %s340 = scalar_lea.hbm %s3, %s339
          %s341 = sshll.u32 %s331, 4
          %s342 = int_to_ptr.vmem [resolvable:$true] %s341
          %347 = dma.vmem_to_hbm [thread:$0]  %s342, 1024, %s340, %s328, 128, 128, 8
        $region36: #{tpu_custom_call.1} parent=31 // pred_fallthru
          _
      $region32: #{tpu_custom_call.1} parent=5 // pred_fallthru
        _
      %p348 = scmp.le.s32.totalorder 2, %s12
      // Predicated region
      $region37: #{tpu_custom_call.1} parent=5 // pred_check
        %p349 = pneg %p348
      $region38: #{tpu_custom_call.1} parent=5 // pred_check_branch
        %351 = sbr.rel (%p349) target = $region40
      $region39: #{tpu_custom_call.1} parent=5 // pred_region
        %s352 = ssub.s32 %s12, 2
        // Predicated region
        $region41: #{tpu_custom_call.1} parent=39 // pred_check
          %p353 = pneg %p109
        $region42: #{tpu_custom_call.1} parent=39 // pred_check_branch
          %355 = sbr.rel (%p353) target = $region44
        $region43: #{tpu_custom_call.1} parent=39 // pred_region
          %s356 = sand.u32 %s94, 1
          %s357 = scalar_lea.sflag [#allocation3], %s356
          %s358 = sand.u32 %s94, 1
          %s359 = smul.addr %s358, 64
          %s360 = scalar_lea.vmem [#allocation2], %s359
          %361 = dma.done %s357, 1024
        $region44: #{tpu_custom_call.1} parent=39 // pred_fallthru
          _
      $region40: #{tpu_custom_call.1} parent=5 // pred_fallthru
        _
    $region6: #{tpu_custom_call.1} parent=1 // loop_footer
      %s16 = sadd.s32 1, %s12
    $region7: #{tpu_custom_call.1} parent=1 // loop_footer_branch
      %11 = sbr.rel target = $region3
    $region8: #{tpu_custom_call.1} parent=1 // loop_exit
      _
    %362 = vsyncpa [#allocation3], 1
    %s363 = scalar_lea.sflag [#allocation3], 1
    %364 = vsyncpa %s363, 1

</llo_original>
